<compile_context>
chip_gen: v6e
topology: v6e:2x2x1
jax: 0.10.0
libtpu: 0.0.40
codegen_flags: <defaults>
</compile_context>

<pallas_src>
import functools
import math

import jax
import jax.numpy as jnp
from jax import lax
from jax.experimental import pallas as pl
from jax.experimental.pallas import tpu as pltpu


def _budgets(block_budget_bytes=None):
    """(per-block working-set budget, vmem_limit_bytes), generation-aware."""
    try:
        cap = int(pltpu.get_tpu_info().vmem_capacity_bytes)
    except Exception:
        cap = 64 * 1024 * 1024                 # conservative (v7x-sized) default
    if cap >= 100 * 1024 * 1024:               # v5e / v6e: 128 MiB VMEM
        budget, limit = 8 * 1024 * 1024, 96 * 1024 * 1024
    else:                                      # v7x: 64 MiB VMEM
        budget, limit = 4 * 1024 * 1024, 48 * 1024 * 1024
    if block_budget_bytes is not None:         # explicit override (tests)
        budget = int(block_budget_bytes)
    return budget, limit


def _sum_all(x):
    """Full reduce of a 2-D tile to (1, 1): lane reduce, then sublane reduce."""
    return jnp.sum(jnp.sum(x, axis=-1, keepdims=True), axis=-2, keepdims=True)


# --------------------------- fused single-pass path -------------------------


def _fused_kernel(g1_ref, b1_ref, h_ref, out_ref, *, inv_n, eps):
    """One resident (cpg, HW) group slab: stats + normalize + modulate."""
    hf = h_ref[0, 0].astype(jnp.float32)                   # (cpg, HW)
    mean = _sum_all(hf) * inv_n                             # (1, 1)
    d = hf - mean
    var = _sum_all(d * d) * inv_n                           # (1, 1) two-pass var
    inv = lax.rsqrt(var + eps)
    a = inv * g1_ref[0, 0]                                  # (cpg, 1)
    out_ref[0, 0] = (d * a + b1_ref[0, 0]).astype(out_ref.dtype)


# ----------------------------- two-pass fallback ----------------------------


def _stats_kernel(h_ref, sum_ref, sumsq_ref, *, hw, hw_tile):
    """Accumulate per-group sum / sum-of-squares over spatial tiles."""
    ti = pl.program_id(2)

    @pl.when(ti == 0)
    def _():
        sum_ref[...] = jnp.zeros_like(sum_ref)
        sumsq_ref[...] = jnp.zeros_like(sumsq_ref)

    hf = h_ref[0, 0].astype(jnp.float32)                    # (cpg, hw_tile)
    if hw % hw_tile != 0:
        # Ragged tail: padded lanes hold undefined data -> mask before reduce.
        col = lax.broadcasted_iota(jnp.int32, hf.shape, 1)
        hf = jnp.where(col < hw - ti * hw_tile, hf, 0.0)
    sum_ref[0, 0] += _sum_all(hf)
    sumsq_ref[0, 0] += _sum_all(hf * hf)


def _apply_kernel(a_ref, b_ref, h_ref, out_ref):
    """Single FMA pass: out = h * a + b with per-channel (column) coeffs."""
    hf = h_ref[0, 0].astype(jnp.float32)                    # (cpg, hw_tile)
    out_ref[0, 0] = (hf * a_ref[0, 0] + b_ref[0, 0]).astype(out_ref.dtype)


# --------------------------------- wrapper ----------------------------------


def adagn_forward(h_nchw, emb, w, b, gamma, beta, *, num_groups, eps=1e-5,
                  block_budget_bytes=None, donate_h=False):
    """AdaGN forward. h_nchw: (B,C,H,W), emb: (B,E), w: (2C,E), b: (2C,)."""
    B, C, H, W = h_nchw.shape
    G = num_groups
    assert C % G == 0, "channels must be divisible by num_groups"
    cpg = C // G
    HW = H * W

    block_budget, vmem_limit = _budgets(block_budget_bytes)

    # ---- emb path, hoisted: SiLU -> Linear (one tiny batched GEMM) ----
    ef = emb.astype(jnp.float32)
    ef = ef * jax.nn.sigmoid(ef)
    emb_out = ef @ w.astype(jnp.float32).T + b.astype(jnp.float32)   # (B, 2C)
    scale, shift = emb_out[:, :C], emb_out[:, C:]

    # Fold the GroupNorm affine + AdaGN modulation into per-(batch, channel)
    # coefficients; the per-group mean / rsqrt(var) are applied in-kernel
    # (fused path) or folded in after the stats pass (fallback path).
    gf = gamma.astype(jnp.float32)[None, :]
    bf = beta.astype(jnp.float32)[None, :]
    s1 = 1.0 + scale
    g1 = (gf * s1).reshape(B, G, cpg, 1)                  # gamma*(1+scale)
    b1 = (bf * s1 + shift).reshape(B, G, cpg, 1)          # beta*(1+scale)+shift

    h_g = h_nchw.reshape(B, G, cpg, HW)                   # metadata-only view
    slab_f32_bytes = cpg * HW * 4                         # per-group f32 slab
    alias = {2: 0} if donate_h else {}

    if slab_f32_bytes <= block_budget:
        # ---- fused single pass: one read + one write of h ----
        kernel = functools.partial(_fused_kernel, inv_n=1.0 / (cpg * HW),
                                   eps=float(eps))
        out = pl.pallas_call(
            kernel,
            out_shape=jax.ShapeDtypeStruct((B, G, cpg, HW), h_nchw.dtype),
            grid_spec=pltpu.PrefetchScalarGridSpec(
                num_scalar_prefetch=0,
                grid=(B, G),
                in_specs=[
                    pl.BlockSpec((1, 1, cpg, 1), lambda bi, gi: (bi, gi, 0, 0)),
                    pl.BlockSpec((1, 1, cpg, 1), lambda bi, gi: (bi, gi, 0, 0)),
                    pl.BlockSpec((1, 1, cpg, HW), lambda bi, gi: (bi, gi, 0, 0)),
                ],
                out_specs=pl.BlockSpec((1, 1, cpg, HW),
                                       lambda bi, gi: (bi, gi, 0, 0)),
            ),
            compiler_params=pltpu.CompilerParams(
                dimension_semantics=("parallel", "parallel"),
                vmem_limit_bytes=vmem_limit),
            input_output_aliases=alias,
        )(g1, b1, h_g)
        return out.reshape(B, C, H, W)

    # ---- fallback: two passes with 128-multiple spatial tiles (+ ragged tail)
    if HW <= 128:
        hw_tile = HW
    else:
        hw_tile = max(128, (block_budget // (cpg * 4) // 128) * 128)
    T = pl.cdiv(HW, hw_tile)

    stats_kernel = functools.partial(_stats_kernel, hw=HW, hw_tile=hw_tile)
    sums, sumsqs = pl.pallas_call(
        stats_kernel,
        out_shape=(jax.ShapeDtypeStruct((B, G, 1, 1), jnp.float32),
                   jax.ShapeDtypeStruct((B, G, 1, 1), jnp.float32)),
        grid_spec=pltpu.PrefetchScalarGridSpec(
            num_scalar_prefetch=0,
            grid=(B, G, T),
            in_specs=[pl.BlockSpec((1, 1, cpg, hw_tile),
                                   lambda bi, gi, ti: (bi, gi, 0, ti))],
            out_specs=[pl.BlockSpec((1, 1, 1, 1), lambda bi, gi, ti: (bi, gi, 0, 0)),
                       pl.BlockSpec((1, 1, 1, 1), lambda bi, gi, ti: (bi, gi, 0, 0))],
        ),
        compiler_params=pltpu.CompilerParams(
            dimension_semantics=("parallel", "parallel", "arbitrary"),
            vmem_limit_bytes=vmem_limit),
    )(h_g)

    # Tiny (B, G) fold of the one-pass stats, then per-(B, C) FMA coefficients.
    n = float(cpg * HW)
    mean_g = sums[..., 0, 0] / n                           # (B, G)
    var_g = jnp.maximum(sumsqs[..., 0, 0] / n - mean_g * mean_g, 0.0)
    inv_g = lax.rsqrt(var_g + eps)
    a_coef = inv_g[:, :, None, None] * g1                  # (B, G, cpg, 1)
    b_coef = b1 - mean_g[:, :, None, None] * a_coef        # (B, G, cpg, 1)

    out = pl.pallas_call(
        _apply_kernel,
        out_shape=jax.ShapeDtypeStruct((B, G, cpg, HW), h_nchw.dtype),
        grid_spec=pltpu.PrefetchScalarGridSpec(
            num_scalar_prefetch=0,
            grid=(B, G, T),
            in_specs=[
                pl.BlockSpec((1, 1, cpg, 1), lambda bi, gi, ti: (bi, gi, 0, 0)),
                pl.BlockSpec((1, 1, cpg, 1), lambda bi, gi, ti: (bi, gi, 0, 0)),
                pl.BlockSpec((1, 1, cpg, hw_tile),
                             lambda bi, gi, ti: (bi, gi, 0, ti)),
            ],
            out_specs=pl.BlockSpec((1, 1, cpg, hw_tile),
                                   lambda bi, gi, ti: (bi, gi, 0, ti)),
        ),
        compiler_params=pltpu.CompilerParams(
            dimension_semantics=("parallel", "parallel", "parallel"),
            vmem_limit_bytes=vmem_limit),
        input_output_aliases=alias,
    )(a_coef, b_coef, h_g)
    return out.reshape(B, C, H, W)


def adagn_ref(h, emb, w, b, gamma, beta, *, num_groups, eps=1e-5):
    """Pure-JAX reference matching PyTorch AdaGN semantics (non-fused path)."""
    B, C, H, W = h.shape
    e = emb * jax.nn.sigmoid(emb)
    emb_out = e @ w.T + b                          # (B, 2C)
    scale, shift = emb_out[:, :C], emb_out[:, C:]
    x = h.astype(jnp.float32).reshape(B, num_groups, -1)
    mean = x.mean(-1, keepdims=True)
    var = ((x - mean) ** 2).mean(-1, keepdims=True)
    xn = (x - mean) / jnp.sqrt(var + eps)
    xn = xn.reshape(B, C, H, W) * gamma[None, :, None, None] + beta[None, :, None, None]
    return (xn * (1.0 + scale)[:, :, None, None] + shift[:, :, None, None]).astype(h.dtype)


if __name__ == "__main__":
    key = jax.random.PRNGKey(0)
    k1, k2, k3, k4, k5, k6, k7 = jax.random.split(key, 7)

    B, E, C, G = 2, 16, 32, 8
    bound = 1.0 / math.sqrt(E)
    emb = jax.random.normal(k2, (B, E), jnp.float32)
    # nn.Linear(emb_channels, 2*out_channels) parameters (deterministic init)
    w = jax.random.uniform(k3, (2 * C, E), jnp.float32, -bound, bound)
    b = jax.random.uniform(k4, (2 * C,), jnp.float32, -bound, bound)
    # nn.GroupNorm affine params (non-trivial to exercise the folding)
    gamma = 1.0 + 0.1 * jax.random.normal(k5, (C,), jnp.float32)
    beta = 0.1 * jax.random.normal(k6, (C,), jnp.float32)

    # 1) fused single-pass path (default, generation-aware budget).
    h1 = jax.random.normal(k1, (B, C, 16, 16), jnp.float32)
    fwd_fused = jax.jit(functools.partial(adagn_forward, num_groups=G))
    out1 = jax.block_until_ready(fwd_fused(h1, emb, w, b, gamma, beta))
    ref1 = adagn_ref(h1, emb, w, b, gamma, beta, num_groups=G)
    assert out1.shape == h1.shape
    err1 = float(jnp.max(jnp.abs(out1 - ref1)))
    assert jnp.allclose(out1, ref1, atol=2e-3, rtol=2e-3), f"fused max_err={err1}"

    # 2) two-pass fallback with ragged spatial tiling (forced tiny budget):
    #    18x18 -> HW=324 = 2*128 + 68-wide masked tail.
    h2 = jax.random.normal(k7, (B, C, 18, 18), jnp.float32)
    fwd_two = jax.jit(functools.partial(adagn_forward, num_groups=G,
                                        block_budget_bytes=2048))
    out2 = jax.block_until_ready(fwd_two(h2, emb, w, b, gamma, beta))
    ref2 = adagn_ref(h2, emb, w, b, gamma, beta, num_groups=G)
    assert out2.shape == h2.shape
    err2 = float(jnp.max(jnp.abs(out2 - ref2)))
    assert jnp.allclose(out2, ref2, atol=2e-3, rtol=2e-3), f"two-pass max_err={err2}"

    print("KERNEL_OK")
</pallas_src>

<mosaic_0001>
module attributes {stable_mosaic.version = 11 : i64} {
  func.func @_fused_kernel(%arg0: i32, %arg1: i32, %arg2: memref<1x1x4x1xf32, #tpu.memory_space<vmem>>, %arg3: memref<1x1x4x1xf32, #tpu.memory_space<vmem>>, %arg4: memref<1x1x4x256xf32, #tpu.memory_space<vmem>>, %arg5: memref<1x1x4x256xf32, #tpu.memory_space<vmem>>) attributes {dimension_semantics = [#tpu.dimension_semantics<parallel>, #tpu.dimension_semantics<parallel>], iteration_bounds = array<i64: 2, 8>, scalar_prefetch = 0 : i64, scratch_operands = 0 : i64, tpu.core_type = #tpu.core_type<tc>, window_params = [{transform_indices = @transform_0, window_bounds = array<i64: 1, 1, 4, 1>}, {transform_indices = @transform_1, window_bounds = array<i64: 1, 1, 4, 1>}, {transform_indices = @transform_2, window_bounds = array<i64: 1, 1, 4, 256>}, {transform_indices = @transform_3, window_bounds = array<i64: 1, 1, 4, 256>}]} {
    %c0 = arith.constant 0 : index
    %c0_0 = arith.constant 0 : index
    %c0_1 = arith.constant 0 : index
    %c0_2 = arith.constant 0 : index
    %0 = vector.load %arg4[%c0, %c0_0, %c0_1, %c0_2] : memref<1x1x4x256xf32, #tpu.memory_space<vmem>>, vector<1x1x4x256xf32>
    %1 = vector.shape_cast %0 : vector<1x1x4x256xf32> to vector<4x256xf32>
    %cst = arith.constant dense<0.000000e+00> : vector<4xf32>
    %2 = vector.multi_reduction <add>, %1, %cst [1] : vector<4x256xf32> to vector<4xf32>
    %3 = vector.shape_cast %2 : vector<4xf32> to vector<4x1xf32>
    %cst_3 = arith.constant dense<0.000000e+00> : vector<1xf32>
    %4 = vector.multi_reduction <add>, %3, %cst_3 [0] : vector<4x1xf32> to vector<1xf32>
    %5 = vector.shape_cast %4 : vector<1xf32> to vector<1x1xf32>
    %cst_4 = arith.constant 9.765625E-4 : f32
    %6 = vector.broadcast %cst_4 : f32 to vector<1x1xf32>
    %7 = arith.mulf %5, %6 : vector<1x1xf32>
    %8 = vector.broadcast %7 : vector<1x1xf32> to vector<4x256xf32>
    %9 = arith.subf %1, %8 : vector<4x256xf32>
    %10 = arith.mulf %9, %9 : vector<4x256xf32>
    %cst_5 = arith.constant dense<0.000000e+00> : vector<4xf32>
    %11 = vector.multi_reduction <add>, %10, %cst_5 [1] : vector<4x256xf32> to vector<4xf32>
    %12 = vector.shape_cast %11 : vector<4xf32> to vector<4x1xf32>
    %cst_6 = arith.constant dense<0.000000e+00> : vector<1xf32>
    %13 = vector.multi_reduction <add>, %12, %cst_6 [0] : vector<4x1xf32> to vector<1xf32>
    %14 = vector.shape_cast %13 : vector<1xf32> to vector<1x1xf32>
    %cst_7 = arith.constant 9.765625E-4 : f32
    %15 = vector.broadcast %cst_7 : f32 to vector<1x1xf32>
    %16 = arith.mulf %14, %15 : vector<1x1xf32>
    %cst_8 = arith.constant 9.99999974E-6 : f32
    %17 = vector.broadcast %cst_8 : f32 to vector<1x1xf32>
    %18 = arith.addf %16, %17 : vector<1x1xf32>
    %19 = math.rsqrt %18 : vector<1x1xf32>
    %c0_9 = arith.constant 0 : index
    %c0_10 = arith.constant 0 : index
    %c0_11 = arith.constant 0 : index
    %c0_12 = arith.constant 0 : index
    %20 = vector.load %arg2[%c0_9, %c0_10, %c0_11, %c0_12] : memref<1x1x4x1xf32, #tpu.memory_space<vmem>>, vector<1x1x4x1xf32>
    %21 = vector.shape_cast %20 : vector<1x1x4x1xf32> to vector<4x1xf32>
    %22 = vector.broadcast %19 : vector<1x1xf32> to vector<4x1xf32>
    %23 = arith.mulf %22, %21 : vector<4x1xf32>
    %24 = vector.broadcast %23 : vector<4x1xf32> to vector<4x256xf32>
    %25 = arith.mulf %9, %24 : vector<4x256xf32>
    %c0_13 = arith.constant 0 : index
    %c0_14 = arith.constant 0 : index
    %c0_15 = arith.constant 0 : index
    %c0_16 = arith.constant 0 : index
    %26 = vector.load %arg3[%c0_13, %c0_14, %c0_15, %c0_16] : memref<1x1x4x1xf32, #tpu.memory_space<vmem>>, vector<1x1x4x1xf32>
    %27 = vector.shape_cast %26 : vector<1x1x4x1xf32> to vector<4x1xf32>
    %28 = vector.broadcast %27 : vector<4x1xf32> to vector<4x256xf32>
    %29 = arith.addf %25, %28 : vector<4x256xf32>
    %c0_17 = arith.constant 0 : index
    %c0_18 = arith.constant 0 : index
    %c0_19 = arith.constant 0 : index
    %c0_20 = arith.constant 0 : index
    %30 = vector.load %arg5[%c0_17, %c0_18, %c0_19, %c0_20] : memref<1x1x4x256xf32, #tpu.memory_space<vmem>>, vector<1x1x4x256xf32>
    %31 = vector.shape_cast %30 : vector<1x1x4x256xf32> to vector<4x256xf32>
    %32 = vector.shape_cast %29 : vector<4x256xf32> to vector<1x1x4x256xf32>
    tpu.vector_store %arg5[%c0_17, %c0_18, %c0_19, %c0_20], %32 {strides = array<i32>} : memref<1x1x4x256xf32, #tpu.memory_space<vmem>>, vector<1x1x4x256xf32>,
    return
  }
  func.func @transform_0(%arg0: i32, %arg1: i32) -> (i32, i32, i32, i32) {
    %c0_i32 = arith.constant 0 : i32
    %c0_i32_0 = arith.constant 0 : i32
    %c0_i32_1 = arith.constant 0 : i32
    return %arg0, %arg1, %c0_i32, %c0_i32_0 : i32, i32, i32, i32
  }
  func.func @transform_1(%arg0: i32, %arg1: i32) -> (i32, i32, i32, i32) {
    %c0_i32 = arith.constant 0 : i32
    %c0_i32_0 = arith.constant 0 : i32
    %c0_i32_1 = arith.constant 0 : i32
    return %arg0, %arg1, %c0_i32, %c0_i32_0 : i32, i32, i32, i32
  }
  func.func @transform_2(%arg0: i32, %arg1: i32) -> (i32, i32, i32, i32) {
    %c0_i32 = arith.constant 0 : i32
    %c0_i32_0 = arith.constant 0 : i32
    %c0_i32_1 = arith.constant 0 : i32
    return %arg0, %arg1, %c0_i32, %c0_i32_0 : i32, i32, i32, i32
  }
  func.func @transform_3(%arg0: i32, %arg1: i32) -> (i32, i32, i32, i32) {
    %c0_i32 = arith.constant 0 : i32
    %c0_i32_0 = arith.constant 0 : i32
    %c0_i32_1 = arith.constant 0 : i32
    return %arg0, %arg1, %c0_i32, %c0_i32_0 : i32, i32, i32, i32
  }
}

</mosaic_0001>

<llo_original>
// kernel: adagn_forward.1
$region0: #{adagn_forward.1}
  #allocation0 [shape = 'u32[]', space=smem, size = 0x4, offset = 0x4, fixed_abs, tag = 'smem constant byte address 0x4 - core index']
  #allocation1 [shape = 'u32[144,128]{1,0:T(1,128)}', space=vmem, size = 0x12000, scoped, tag = 'internal scratch']
  %s0 = inlined_call_operand.vmem [shape: f32[2,8,4,1], index: 0, kind: input, shape index: {}]
  %s1 = inlined_call_operand.vmem [shape: f32[2,8,4,1], index: 1, kind: input, shape index: {}]
  %s2 = inlined_call_operand.vmem [shape: f32[2,8,4,256], index: 2, kind: input, shape index: {}]
  %s3 = inlined_call_operand.vmem [shape: f32[2,8,4,256], index: 3, kind: output, shape index: {}]
  %s4 = sld [smem:[#allocation0]]
  $region45: #{adagn_forward.1} parent=0
    _
  %s6 = ssub.s32 1, %s4
  %s7 = scalar_select 0, %s6, %s4
  loop: start=0, step=1, limit=18
  $region2: #{adagn_forward.1} parent=0 // loop_pre_header
    _
  $region3: #{adagn_forward.1} parent=0 // loop_header
    %s9 = sphi 0, %s13
    %p10 = scmp.ge.s32.totalorder %s9, 18
    %s16 = sphi 0, %s28
    %s17 = sphi 0, %s24
    %s18 = sphi 0, %s16
    %s19 = sphi 0, %s17
    %s20 = sphi 0, %s18
    %s21 = sphi 0, %s19
    %s33 = sphi 0, %s35
    %s36 = sphi 0, %s33
    %s37 = sphi 0, %s36
    %s53 = sphi 0, %s37
    %s61 = sphi 0, %s63
    %s64 = sphi 0, %s61
    %s65 = sphi 0, %s64
    %s81 = sphi 0, %s65
    %s89 = sphi 0, %s91
    %s92 = sphi 0, %s89
    %s93 = sphi 0, %s92
    %s109 = sphi 0, %s93
    %s117 = sphi 0, %s119
    %s120 = sphi 0, %s117
    %s121 = sphi 0, %s120
    %s137 = sphi 0, %s121
  $region4: #{adagn_forward.1} parent=0 // loop_header_branch
    %12 = sbr.rel (%p10) target = $region8
  $region5: #{adagn_forward.1} parent=0 // loop_body
    %s14 = ssub.s32 %s9, 1
    %s15 = ssub.s32 %s9, 2
    %s22 = sadd.s32 1, %s17
    %p23 = scmp.ge.s32.totalorder %s22, 8
    %s24 = scalar_select %p23, 0, %s22
    %s25 = sadd.s32 1, %s16
    %s26 = scalar_select %p23, %s25, %s16
    %p27 = scmp.ge.s32.totalorder %s26, 2
    %s28 = scalar_select %p27, 0, %s26
    %s29 = ssub.s32 %s16, %s28
    %s30 = ssub.s32 %s17, %s24
    %s31 = sor.u32 %s29, %s30
    %p32 = scmp.eq.s32.totalorder %s31, 0
    %s34 = sadd.s32 %s33, 1
    %s35 = scalar_select %p32, %s33, %s34
    %p38 = pneg %p32
    %p39 = scmp.eq.s32.totalorder %s9, 15
    %p40 = por %p38, %p39
    %p41 = scmp.ne.s32.totalorder %s33, %s36
    %p42 = scmp.eq.s32.totalorder %s9, 0
    %p43 = por %p41, %p42
    %p44 = scmp.ne.s32.totalorder %s33, %s36
    %p45 = scmp.eq.s32.totalorder %s14, 15
    %p46 = por %p44, %p45
    %p47 = scmp.ne.s32.totalorder %s36, %s37
    %p48 = scmp.eq.s32.totalorder %s14, 0
    %p49 = por %p47, %p48
    %p50 = scmp.ne.s32.totalorder %s36, %s37
    %p51 = scmp.eq.s32.totalorder %s15, 15
    %p52 = por %p50, %p51
    %p54 = scmp.ne.s32.totalorder %s37, %s53
    %p55 = scmp.eq.s32.totalorder %s15, 0
    %p56 = por %p54, %p55
    %s57 = ssub.s32 %s16, %s28
    %s58 = ssub.s32 %s17, %s24
    %s59 = sor.u32 %s57, %s58
    %p60 = scmp.eq.s32.totalorder %s59, 0
    %s62 = sadd.s32 %s61, 1
    %s63 = scalar_select %p60, %s61, %s62
    %p66 = pneg %p60
    %p67 = scmp.eq.s32.totalorder %s9, 15
    %p68 = por %p66, %p67
    %p69 = scmp.ne.s32.totalorder %s61, %s64
    %p70 = scmp.eq.s32.totalorder %s9, 0
    %p71 = por %p69, %p70
    %p72 = scmp.ne.s32.totalorder %s61, %s64
    %p73 = scmp.eq.s32.totalorder %s14, 15
    %p74 = por %p72, %p73
    %p75 = scmp.ne.s32.totalorder %s64, %s65
    %p76 = scmp.eq.s32.totalorder %s14, 0
    %p77 = por %p75, %p76
    %p78 = scmp.ne.s32.totalorder %s64, %s65
    %p79 = scmp.eq.s32.totalorder %s15, 15
    %p80 = por %p78, %p79
    %p82 = scmp.ne.s32.totalorder %s65, %s81
    %p83 = scmp.eq.s32.totalorder %s15, 0
    %p84 = por %p82, %p83
    %s85 = ssub.s32 %s16, %s28
    %s86 = ssub.s32 %s17, %s24
    %s87 = sor.u32 %s85, %s86
    %p88 = scmp.eq.s32.totalorder %s87, 0
    %s90 = sadd.s32 %s89, 1
    %s91 = scalar_select %p88, %s89, %s90
    %p94 = pneg %p88
    %p95 = scmp.eq.s32.totalorder %s9, 15
    %p96 = por %p94, %p95
    %p97 = scmp.ne.s32.totalorder %s89, %s92
    %p98 = scmp.eq.s32.totalorder %s9, 0
    %p99 = por %p97, %p98
    %p100 = scmp.ne.s32.totalorder %s89, %s92
    %p101 = scmp.eq.s32.totalorder %s14, 15
    %p102 = por %p100, %p101
    %p103 = scmp.ne.s32.totalorder %s92, %s93
    %p104 = scmp.eq.s32.totalorder %s14, 0
    %p105 = por %p103, %p104
    %p106 = scmp.ne.s32.totalorder %s92, %s93
    %p107 = scmp.eq.s32.totalorder %s15, 15
    %p108 = por %p106, %p107
    %p110 = scmp.ne.s32.totalorder %s93, %s109
    %p111 = scmp.eq.s32.totalorder %s15, 0
    %p112 = por %p110, %p111
    %s113 = ssub.s32 %s16, %s28
    %s114 = ssub.s32 %s17, %s24
    %s115 = sor.u32 %s113, %s114
    %p116 = scmp.eq.s32.totalorder %s115, 0
    %s118 = sadd.s32 %s117, 1
    %s119 = scalar_select %p116, %s117, %s118
    %p122 = pneg %p116
    %p123 = scmp.eq.s32.totalorder %s9, 15
    %p124 = por %p122, %p123
    %p125 = scmp.ne.s32.totalorder %s117, %s120
    %p126 = scmp.eq.s32.totalorder %s9, 0
    %p127 = por %p125, %p126
    %p128 = scmp.ne.s32.totalorder %s117, %s120
    %p129 = scmp.eq.s32.totalorder %s14, 15
    %p130 = por %p128, %p129
    %p131 = scmp.ne.s32.totalorder %s120, %s121
    %p132 = scmp.eq.s32.totalorder %s14, 0
    %p133 = por %p131, %p132
    %p134 = scmp.ne.s32.totalorder %s120, %s121
    %p135 = scmp.eq.s32.totalorder %s15, 15
    %p136 = por %p134, %p135
    %p138 = scmp.ne.s32.totalorder %s121, %s137
    %p139 = scmp.eq.s32.totalorder %s15, 0
    %p140 = por %p138, %p139
    %p141 = scmp.le.s32.totalorder 1, %s9
    %p142 = scmp.lt.s32.totalorder %s9, 17
    %p143 = pnand %p141, %p142
    %p144 = pneg %p143
    // Predicated region
    $region9: #{adagn_forward.1} parent=5 // pred_check
      _
    $region10: #{adagn_forward.1} parent=5 // pred_check_branch
      %146 = sbr.rel (%p143) target = $region12
    $region11: #{adagn_forward.1} parent=5 // pred_region
      %s147 = ssub.s32 %s9, 1
    $region12: #{adagn_forward.1} parent=5 // pred_fallthru
      _
    %p148 = scmp.lt.s32.totalorder %s9, 16
    // Predicated region
    $region13: #{adagn_forward.1} parent=5 // pred_check
      %p149 = pneg %p148
    $region14: #{adagn_forward.1} parent=5 // pred_check_branch
      %151 = sbr.rel (%p149) target = $region16
    $region15: #{adagn_forward.1} parent=5 // pred_region
      // Predicated region
      $region17: #{adagn_forward.1} parent=15 // pred_check
        %p152 = pneg %p43
      $region18: #{adagn_forward.1} parent=15 // pred_check_branch
        %154 = sbr.rel (%p152) target = $region20
      $region19: #{adagn_forward.1} parent=15 // pred_region
        %p155 = scmp.lt.s32.totalorder %s16, 1
        %s156 = scalar_select %p155, %s16, 1
        %p157 = scmp.lt.s32.totalorder %s17, 7
        %s158 = scalar_select %p157, %s17, 7
        %s159 = smul.addr %s156, 8
        %s160 = sadd.s32 %s158, %s159
        %s161 = smul.addr %s160, 4
        %s162 = scalar_lea.vmem %s0, %s161
      $region20: #{adagn_forward.1} parent=15 // pred_fallthru
        _
      // Predicated region
      $region21: #{adagn_forward.1} parent=15 // pred_check
        %p163 = pneg %p71
      $region22: #{adagn_forward.1} parent=15 // pred_check_branch
        %165 = sbr.rel (%p163) target = $region24
      $region23: #{adagn_forward.1} parent=15 // pred_region
        %p166 = scmp.lt.s32.totalorder %s16, 1
        %s167 = scalar_select %p166, %s16, 1
        %p168 = scmp.lt.s32.totalorder %s17, 7
        %s169 = scalar_select %p168, %s17, 7
        %s170 = smul.addr %s167, 8
        %s171 = sadd.s32 %s169, %s170
        %s172 = smul.addr %s171, 4
        %s173 = scalar_lea.vmem %s1, %s172
      $region24: #{adagn_forward.1} parent=15 // pred_fallthru
        _
      // Predicated region
      $region25: #{adagn_forward.1} parent=15 // pred_check
        %p174 = pneg %p99
      $region26: #{adagn_forward.1} parent=15 // pred_check_branch
        %176 = sbr.rel (%p174) target = $region28
      $region27: #{adagn_forward.1} parent=15 // pred_region
        %p177 = scmp.lt.s32.totalorder %s16, 1
        %s178 = scalar_select %p177, %s16, 1
        %p179 = scmp.lt.s32.totalorder %s17, 7
        %s180 = scalar_select %p179, %s17, 7
        %s181 = smul.addr %s180, 2
        %s182 = smul.addr %s178, 16
        %s183 = sadd.s32 %s181, %s182
        %s184 = smul.addr %s183, 4
        %s185 = scalar_lea.vmem %s2, %s184
      $region28: #{adagn_forward.1} parent=15 // pred_fallthru
        _
    $region16: #{adagn_forward.1} parent=5 // pred_fallthru
      _
    %p186 = scmp.le.s32.totalorder 1, %s9
    %p187 = scmp.lt.s32.totalorder %s9, 17
    %p188 = pnand %p186, %p187
    %p189 = pneg %p188
    // Predicated region
    $region29: #{adagn_forward.1} parent=5 // pred_check
      _
    $region30: #{adagn_forward.1} parent=5 // pred_check_branch
      %191 = sbr.rel (%p188) target = $region32
    $region31: #{adagn_forward.1} parent=5 // pred_region
      %s192 = ssub.s32 %s9, 1
      %p193 = scmp.lt.s32.totalorder %s18, 1
      %s194 = scalar_select %p193, %s18, 1
      %p195 = scmp.lt.s32.totalorder %s19, 7
      %s196 = scalar_select %p195, %s19, 7
      %s197 = smul.addr %s194, 8
      %s198 = sadd.s32 %s196, %s197
      %s199 = smul.addr %s198, 4
      %s200 = scalar_lea.vmem %s0, %s199
      %p201 = pneg %p49
      %p202 = pneg %p46
      %p203 = scmp.lt.s32.totalorder %s18, 1
      %s204 = scalar_select %p203, %s18, 1
      %p205 = scmp.lt.s32.totalorder %s19, 7
      %s206 = scalar_select %p205, %s19, 7
      %s207 = smul.addr %s204, 8
      %s208 = sadd.s32 %s206, %s207
      %s209 = smul.addr %s208, 4
      %s210 = scalar_lea.vmem %s1, %s209
      %p211 = pneg %p77
      %p212 = pneg %p74
      %p213 = scmp.lt.s32.totalorder %s18, 1
      %s214 = scalar_select %p213, %s18, 1
      %p215 = scmp.lt.s32.totalorder %s19, 7
      %s216 = scalar_select %p215, %s19, 7
      %s217 = smul.addr %s216, 2
      %s218 = smul.addr %s214, 16
      %s219 = sadd.s32 %s217, %s218
      %s220 = smul.addr %s219, 4
      %s221 = scalar_lea.vmem %s2, %s220
      %p222 = pneg %p105
      %p223 = pneg %p102
      %p224 = pneg %p133
      %p225 = pneg %p130
      %p226 = scmp.lt.s32.totalorder %s18, 1
      %s227 = scalar_select %p226, %s18, 1
      %p228 = scmp.lt.s32.totalorder %s19, 7
      %s229 = scalar_select %p228, %s19, 7
      %s230 = smul.addr %s229, 2
      %s231 = smul.addr %s227, 16
      %s232 = sadd.s32 %s230, %s231
      %s233 = smul.addr %s232, 4
      %s234 = scalar_lea.vmem %s3, %s233
      %p235 = scmp.lt.s32.totalorder %s18, 1
      %s236 = scalar_select %p235, %s18, 1
      %p237 = scmp.lt.s32.totalorder %s19, 7
      %s238 = scalar_select %p237, %s19, 7
      %s239 = smul.addr %s236, 8
      %s240 = sadd.s32 %s238, %s239
      %s241 = smul.addr %s240, 4
      %s242 = scalar_lea.vmem %s0, %s241
      %p243 = scmp.lt.s32.totalorder %s18, 1
      %s244 = scalar_select %p243, %s18, 1
      %p245 = scmp.lt.s32.totalorder %s19, 7
      %s246 = scalar_select %p245, %s19, 7
      %s247 = smul.addr %s244, 8
      %s248 = sadd.s32 %s246, %s247
      %s249 = smul.addr %s248, 4
      %s250 = scalar_lea.vmem %s1, %s249
      %p251 = scmp.lt.s32.totalorder %s18, 1
      %s252 = scalar_select %p251, %s18, 1
      %p253 = scmp.lt.s32.totalorder %s19, 7
      %s254 = scalar_select %p253, %s19, 7
      %s255 = smul.addr %s254, 2
      %s256 = smul.addr %s252, 16
      %s257 = sadd.s32 %s255, %s256
      %s258 = smul.addr %s257, 4
      %s259 = scalar_lea.vmem %s2, %s258
      %p260 = scmp.lt.s32.totalorder %s18, 1
      %s261 = scalar_select %p260, %s18, 1
      %p262 = scmp.lt.s32.totalorder %s19, 7
      %s263 = scalar_select %p262, %s19, 7
      %s264 = smul.addr %s263, 2
      %s265 = smul.addr %s261, 16
      %s266 = sadd.s32 %s264, %s265
      %s267 = smul.addr %s266, 4
      %s268 = scalar_lea.vmem %s3, %s267
      %v269 = vld [vmem:[%s259] sm:$0xff]
      %v271 = vcombine.high %v269, %v269
      %vm273 = vcmask 1043456
      %v274 = vsel %vm273, %v269, 0.0
      %v275 = vsel %vm273, %v271, 0.0
      %v276 = vadd.f32 %v274, %v275
      %277 = vadd.xlane.f32.xlu0 %v276
      %v278 = vpop.xlane.xlu0 %277
      %v279 = vsel %vm273, %v278, 0.0
      %v280 = vrot.slane %v279, 4
      %v281 = vadd.f32 %v279, %v280
      %v282 = vrot.slane %v281, 2
      %v283 = vadd.f32 %v281, %v282
      %v284 = vrot.slane %v283, 1
      %v285 = vadd.f32 %v283, %v284
      %v286 = vmul.f32 %v285, 0.0009765625
      %v287 = vsub.f32 %v269, %v286
      %v288 = vmul.f32 %v287, %v287
      %v290 = vcombine.high %v288, %v288
      %v292 = vsel %vm273, %v288, 0.0
      %v293 = vsel %vm273, %v290, 0.0
      %v294 = vadd.f32 %v292, %v293
      %295 = vadd.xlane.f32.xlu0 %v294
      %v296 = vpop.xlane.xlu0 %295
      %v297 = vsel %vm273, %v296, 0.0
      %v298 = vrot.slane %v297, 4
      %v299 = vadd.f32 %v297, %v298
      %v300 = vrot.slane %v299, 2
      %v301 = vadd.f32 %v299, %v300
      %v302 = vrot.slane %v301, 1
      %v303 = vadd.f32 %v301, %v302
      %v304 = vmul.f32 %v303, 0.0009765625
      %v305 = vadd.f32 %v304, 1e-05
      %v306 = vrsqrt.pop %v305
      %v307 = vld [vmem:[%s242] sm:$0xf]
      %v308 = vmul.f32 %v306, %v307
      %310 = vset.pattern.permute.xlu0 0
      %311 = vperm.xlu0 %310, %v308
      %v312 = vpop.permute.xlu0 %311
      %v314 = vunpack.c.l.s4 839922192
      %v315 = vunpack.c.0.s8 %v314
      %v316 = vlaneseq
      %v317 = vshrl.u32 %v316, 7
      %v318 = vsub.s32 %v315, %v317
      %v319 = vrot.slane %v312, %v318
      %v321 = vmul.f32 %v287, %v319
      %v322 = vld [vmem:[%s250] sm:$0xf]
      %324 = vset.pattern.permute.xlu0 0
      %325 = vperm.xlu0 %324, %v322
      %v326 = vpop.permute.xlu0 %325
      %v328 = vunpack.c.l.s4 839922192
      %v329 = vunpack.c.0.s8 %v328
      %v330 = vlaneseq
      %v331 = vshrl.u32 %v330, 7
      %v332 = vsub.s32 %v329, %v331
      %v333 = vrot.slane %v326, %v332
      %v335 = vadd.f32 %v321, %v333
      %336 = vst [vmem:[%s268] sm:$0xff] %v335
      %p337 = scmp.lt.s32.totalorder %s18, 1
      %s338 = scalar_select %p337, %s18, 1
      %p339 = scmp.lt.s32.totalorder %s19, 7
      %s340 = scalar_select %p339, %s19, 7
      %s341 = smul.addr %s340, 2
      %s342 = smul.addr %s338, 16
      %s343 = sadd.s32 %s341, %s342
      %s344 = smul.addr %s343, 4
      %s345 = scalar_lea.vmem %s3, %s344
      // Predicated region
      $region33: #{adagn_forward.1} parent=31 // pred_check
        %p346 = pneg %p130
      $region34: #{adagn_forward.1} parent=31 // pred_check_branch
        %348 = sbr.rel (%p346) target = $region36
      $region35: #{adagn_forward.1} parent=31 // pred_region
        _
      $region36: #{adagn_forward.1} parent=31 // pred_fallthru
        _
    $region32: #{adagn_forward.1} parent=5 // pred_fallthru
      _
    %p349 = scmp.le.s32.totalorder 2, %s9
    // Predicated region
    $region37: #{adagn_forward.1} parent=5 // pred_check
      %p350 = pneg %p349
    $region38: #{adagn_forward.1} parent=5 // pred_check_branch
      %352 = sbr.rel (%p350) target = $region40
    $region39: #{adagn_forward.1} parent=5 // pred_region
      %s353 = ssub.s32 %s9, 2
      // Predicated region
      $region41: #{adagn_forward.1} parent=39 // pred_check
        %p354 = pneg %p136
      $region42: #{adagn_forward.1} parent=39 // pred_check_branch
        %356 = sbr.rel (%p354) target = $region44
      $region43: #{adagn_forward.1} parent=39 // pred_region
        %p357 = scmp.lt.s32.totalorder %s20, 1
        %s358 = scalar_select %p357, %s20, 1
        %p359 = scmp.lt.s32.totalorder %s21, 7
        %s360 = scalar_select %p359, %s21, 7
        %s361 = smul.addr %s360, 2
        %s362 = smul.addr %s358, 16
        %s363 = sadd.s32 %s361, %s362
        %s364 = smul.addr %s363, 4
        %s365 = scalar_lea.vmem %s3, %s364
      $region44: #{adagn_forward.1} parent=39 // pred_fallthru
        _
    $region40: #{adagn_forward.1} parent=5 // pred_fallthru
      _
  $region6: #{adagn_forward.1} parent=0 // loop_footer
    %s13 = sadd.s32 1, %s9
  $region7: #{adagn_forward.1} parent=0 // loop_footer_branch
    %8 = sbr.rel target = $region3
  $region8: #{adagn_forward.1} parent=0 // loop_exit
    _

</llo_original>
